<compile_context>
chip_gen: v7x
topology: tpu7x:2x2x1
jax: 0.10.0
libtpu: 0.0.40
codegen_flags: <defaults>
</compile_context>

<pallas_src>
import functools

import jax
import jax.numpy as jnp
from jax import lax
from jax.experimental import pallas as pl
from jax.experimental.pallas import tpu as pltpu


def _mlp_kernel(x_ref, w1_ref, b1_ref, w2_ref, b2_ref, w3_ref, b3_ref, o_ref):
    # x: (6, TM) bf16   w1: (H, 6) bf16   w2: (H, H) bf16   w3: (3, H) bf16
    # b1/b2: (H, 1) f32  b3: (3, 1) f32   o: (3, TM) f32
    f32 = jnp.float32
    bf16 = jnp.bfloat16
    # Canonical matmul: contract lhs dim 1 with rhs dim 0 -> (out, TM).
    dn_mm = (((1,), (0,)), ((), ()))

    x = x_ref[...]                                                  # (6, TM) bf16

    h1 = lax.dot_general(w1_ref[...], x, dn_mm,
                         preferred_element_type=f32) + b1_ref[...]  # (H, TM) f32
    h1 = jnp.maximum(h1, 0.0)

    h2 = lax.dot_general(w2_ref[...], h1.astype(bf16), dn_mm,
                         preferred_element_type=f32) + b2_ref[...]  # (H, TM) f32
    h2 = jnp.maximum(h2, 0.0)

    o_ref[...] = lax.dot_general(w3_ref[...], h2.astype(bf16), dn_mm,
                                 preferred_element_type=f32) + b3_ref[...]


@functools.partial(jax.jit, static_argnames=("tile_m", "transpose_output"))
def dirnn_mlp(points, normals, w1, b1, w2, b2, w3, b3, *,
              tile_m=2048, transpose_output=True):
    """points, normals: (N, 3); weights in torch layout (out, in) -> dirs.

    Returns (N, 3) f32 (or the kernel-native lane-dense (3, N) if
    transpose_output=False).  tile_m is rounded/clamped to a multiple of 128 and
    capped so the grid has >= 2 steps when N allows (v7x core sharding).
    """
    n = points.shape[0]
    hidden = w1.shape[0]
    fout = w3.shape[0]

    bf16, f32 = jnp.bfloat16, jnp.float32

    # Fused torch.cat([points, normals], dim=1), transposed to lane-dense (6, N).
    # bf16 halves the only HBM traffic that scales with N.
    x6t = jnp.concatenate([points, normals], axis=1).T.astype(bf16)   # (6, N)

    # Weights cast once to bf16 (MXU operands); biases stay f32 column vectors.
    w1b = w1.astype(bf16)                   # (H, 6)
    w2b = w2.astype(bf16)                   # (H, H)
    w3b = w3.astype(bf16)                   # (3, H)
    b1c = b1.reshape(hidden, 1).astype(f32)
    b2c = b2.reshape(hidden, 1).astype(f32)
    b3c = b3.reshape(fout, 1).astype(f32)

    # Clamp tile_m: multiple of 128, and small enough that grid_m >= 2 when
    # N > 128 (keeps both TensorCores busy on v7x under ("parallel",)).
    max_useful = max(128, ((pl.cdiv(n, 2) + 127) // 128) * 128)
    tile_m = max(128, min(int(tile_m), max_useful))
    tile_m = (tile_m // 128) * 128

    grid_m = pl.cdiv(n, tile_m)
    n_pad = grid_m * tile_m   # padded output buffer; tail columns sliced off below

    out = pl.pallas_call(
        _mlp_kernel,
        out_shape=jax.ShapeDtypeStruct((fout, n_pad), f32),
        grid_spec=pltpu.PrefetchScalarGridSpec(
            num_scalar_prefetch=0,
            grid=(grid_m,),
            in_specs=[
                pl.BlockSpec((6, tile_m), lambda i: (0, i)),        # x = [pts;nrm]^T
                pl.BlockSpec((hidden, 6), lambda i: (0, 0)),        # W1
                pl.BlockSpec((hidden, 1), lambda i: (0, 0)),        # b1
                pl.BlockSpec((hidden, hidden), lambda i: (0, 0)),   # W2
                pl.BlockSpec((hidden, 1), lambda i: (0, 0)),        # b2
                pl.BlockSpec((fout, hidden), lambda i: (0, 0)),     # W3
                pl.BlockSpec((fout, 1), lambda i: (0, 0)),          # b3
            ],
            out_specs=pl.BlockSpec((fout, tile_m), lambda i: (0, i)),
        ),
        compiler_params=pltpu.CompilerParams(
            dimension_semantics=("parallel",)),
    )(x6t, w1b, b1c, w2b, b2c, w3b, b3c)

    out = out[:, :n]                 # drop padded tail columns
    return out.T if transpose_output else out


def init_params(key, hidden_dim):
    """Deterministic init mimicking torch.nn.Linear (uniform +/- 1/sqrt(fan_in)).

    Weights stored torch-style: W (out_features, in_features), b (out_features,).
    """
    ks = jax.random.split(key, 6)

    def lin(kw, kb, fan_in, fan_out):
        bound = 1.0 / jnp.sqrt(jnp.float32(fan_in))
        w = jax.random.uniform(kw, (fan_out, fan_in), jnp.float32, -bound, bound)
        b = jax.random.uniform(kb, (fan_out,), jnp.float32, -bound, bound)
        return w, b

    w1, b1 = lin(ks[0], ks[1], 6, hidden_dim)
    w2, b2 = lin(ks[2], ks[3], hidden_dim, hidden_dim)
    w3, b3 = lin(ks[4], ks[5], hidden_dim, 3)
    return w1, b1, w2, b2, w3, b3


if __name__ == "__main__":
    key = jax.random.PRNGKey(0)
    k_pts, k_nrm, k_par = jax.random.split(key, 3)

    n_points = 1000     # not a multiple of tile_m -> exercises the bounded tail block
    hidden_dim = 128    # module default hidden_dim

    points = jax.random.normal(k_pts, (n_points, 3), jnp.float32)
    normals = jax.random.normal(k_nrm, (n_points, 3), jnp.float32)
    normals = normals / jnp.linalg.norm(normals, axis=1, keepdims=True)

    params = init_params(k_par, hidden_dim)

    dirs = dirnn_mlp(points, normals, *params, tile_m=512)   # grid_m = 2
    dirs = jax.block_until_ready(dirs)

    w1, b1, w2, b2, w3, b3 = params
    bf16, f32 = jnp.bfloat16, jnp.float32
    x = jnp.concatenate([points, normals], axis=1)

    # Reference 1: bf16-operand / f32-accumulate, matching the kernel's dots.
    def bdot(a, b):
        return jnp.dot(a.astype(bf16), b.astype(bf16), preferred_element_type=f32)

    h = jnp.maximum(bdot(x, w1.T) + b1, 0.0)
    h = jnp.maximum(bdot(h, w2.T) + b2, 0.0)
    ref_bf16 = bdot(h, w3.T) + b3

    # Reference 2: plain f32 (sanity bound on the bf16 quantization error).
    h32 = jnp.maximum(x @ w1.T + b1, 0.0)
    h32 = jnp.maximum(h32 @ w2.T + b2, 0.0)
    ref_f32 = h32 @ w3.T + b3

    assert dirs.shape == (n_points, 3)
    err_bf = float(jnp.max(jnp.abs(dirs - ref_bf16)))
    err_f32 = float(jnp.max(jnp.abs(dirs - ref_f32)))
    assert jnp.allclose(dirs, ref_bf16, atol=2e-3, rtol=2e-3), err_bf
    assert jnp.allclose(dirs, ref_f32, atol=5e-2, rtol=5e-2), err_f32

    print("KERNEL_OK")
</pallas_src>

<mosaic_0001>
module attributes {stable_mosaic.version = 11 : i64} {
  func.func @_mlp_kernel(%arg0: i32, %arg1: memref<6x512xbf16, #tpu.memory_space<vmem>>, %arg2: memref<128x6xbf16, #tpu.memory_space<vmem>>, %arg3: memref<128x1xf32, #tpu.memory_space<vmem>>, %arg4: memref<128x128xbf16, #tpu.memory_space<vmem>>, %arg5: memref<128x1xf32, #tpu.memory_space<vmem>>, %arg6: memref<3x128xbf16, #tpu.memory_space<vmem>>, %arg7: memref<3x1xf32, #tpu.memory_space<vmem>>, %arg8: memref<3x512xf32, #tpu.memory_space<vmem>>) attributes {dimension_semantics = [#tpu.dimension_semantics<parallel>], iteration_bounds = array<i64: 2>, scalar_prefetch = 0 : i64, scratch_operands = 0 : i64, tpu.core_type = #tpu.core_type<tc>, window_params = [{transform_indices = @transform_0, window_bounds = array<i64: 6, 512>}, {pipeline_mode = #tpu.pipeline_mode<synchronous>, transform_indices = @transform_1, window_bounds = array<i64: 128, 6>}, {pipeline_mode = #tpu.pipeline_mode<synchronous>, transform_indices = @transform_2, window_bounds = array<i64: 128, 1>}, {pipeline_mode = #tpu.pipeline_mode<synchronous>, transform_indices = @transform_3, window_bounds = array<i64: 128, 128>}, {pipeline_mode = #tpu.pipeline_mode<synchronous>, transform_indices = @transform_4, window_bounds = array<i64: 128, 1>}, {pipeline_mode = #tpu.pipeline_mode<synchronous>, transform_indices = @transform_5, window_bounds = array<i64: 3, 128>}, {pipeline_mode = #tpu.pipeline_mode<synchronous>, transform_indices = @transform_6, window_bounds = array<i64: 3, 1>}, {transform_indices = @transform_7, window_bounds = array<i64: 3, 512>}]} {
    %c0 = arith.constant 0 : index
    %c0_0 = arith.constant 0 : index
    %0 = vector.load %arg1[%c0, %c0_0] : memref<6x512xbf16, #tpu.memory_space<vmem>>, vector<6x512xbf16>
    %c0_1 = arith.constant 0 : index
    %c0_2 = arith.constant 0 : index
    %1 = vector.load %arg2[%c0_1, %c0_2] : memref<128x6xbf16, #tpu.memory_space<vmem>>, vector<128x6xbf16>
    %cst = arith.constant dense<0.000000e+00> : vector<128x512xf32>
    %2 = tpu.matmul %1, %0, %cst {dimension_numbers = #tpu.dot_dimension_numbers<[1], [0], [0], [1], [0, 0, 1, 1], [], []>} : vector<128x6xbf16>, vector<6x512xbf16>, vector<128x512xf32> -> vector<128x512xf32>
    %c0_3 = arith.constant 0 : index
    %c0_4 = arith.constant 0 : index
    %3 = vector.load %arg3[%c0_3, %c0_4] : memref<128x1xf32, #tpu.memory_space<vmem>>, vector<128x1xf32>
    %4 = vector.broadcast %3 : vector<128x1xf32> to vector<128x512xf32>
    %5 = arith.addf %2, %4 : vector<128x512xf32>
    %cst_5 = arith.constant 0.000000e+00 : f32
    %6 = vector.broadcast %cst_5 : f32 to vector<128x512xf32>
    %7 = arith.maximumf %5, %6 : vector<128x512xf32>
    %c0_6 = arith.constant 0 : index
    %c0_7 = arith.constant 0 : index
    %8 = vector.load %arg4[%c0_6, %c0_7] : memref<128x128xbf16, #tpu.memory_space<vmem>>, vector<128x128xbf16>
    %9 = arith.truncf %7 : vector<128x512xf32> to vector<128x512xbf16>
    %cst_8 = arith.constant dense<0.000000e+00> : vector<128x512xf32>
    %10 = tpu.matmul %8, %9, %cst_8 {dimension_numbers = #tpu.dot_dimension_numbers<[1], [0], [0], [1], [0, 0, 1, 1], [], []>} : vector<128x128xbf16>, vector<128x512xbf16>, vector<128x512xf32> -> vector<128x512xf32>
    %c0_9 = arith.constant 0 : index
    %c0_10 = arith.constant 0 : index
    %11 = vector.load %arg5[%c0_9, %c0_10] : memref<128x1xf32, #tpu.memory_space<vmem>>, vector<128x1xf32>
    %12 = vector.broadcast %11 : vector<128x1xf32> to vector<128x512xf32>
    %13 = arith.addf %10, %12 : vector<128x512xf32>
    %cst_11 = arith.constant 0.000000e+00 : f32
    %14 = vector.broadcast %cst_11 : f32 to vector<128x512xf32>
    %15 = arith.maximumf %13, %14 : vector<128x512xf32>
    %c0_12 = arith.constant 0 : index
    %c0_13 = arith.constant 0 : index
    %16 = vector.load %arg6[%c0_12, %c0_13] : memref<3x128xbf16, #tpu.memory_space<vmem>>, vector<3x128xbf16>
    %17 = arith.truncf %15 : vector<128x512xf32> to vector<128x512xbf16>
    %cst_14 = arith.constant dense<0.000000e+00> : vector<3x512xf32>
    %18 = tpu.matmul %16, %17, %cst_14 {dimension_numbers = #tpu.dot_dimension_numbers<[1], [0], [0], [1], [0, 0, 1, 1], [], []>} : vector<3x128xbf16>, vector<128x512xbf16>, vector<3x512xf32> -> vector<3x512xf32>
    %c0_15 = arith.constant 0 : index
    %c0_16 = arith.constant 0 : index
    %19 = vector.load %arg7[%c0_15, %c0_16] : memref<3x1xf32, #tpu.memory_space<vmem>>, vector<3x1xf32>
    %20 = vector.broadcast %19 : vector<3x1xf32> to vector<3x512xf32>
    %21 = arith.addf %18, %20 : vector<3x512xf32>
    %c0_17 = arith.constant 0 : index
    %c0_18 = arith.constant 0 : index
    %22 = vector.load %arg8[%c0_17, %c0_18] : memref<3x512xf32, #tpu.memory_space<vmem>>, vector<3x512xf32>
    tpu.vector_store %arg8[%c0_17, %c0_18], %21 {strides = array<i32>} : memref<3x512xf32, #tpu.memory_space<vmem>>, vector<3x512xf32>,
    return
  }
  func.func @transform_0(%arg0: i32) -> (i32, i32) {
    %c0_i32 = arith.constant 0 : i32
    %c0_i32_0 = arith.constant 0 : i32
    return %c0_i32, %arg0 : i32, i32
  }
  func.func @transform_1(%arg0: i32) -> (i32, i32) {
    %c0_i32 = arith.constant 0 : i32
    %c0_i32_0 = arith.constant 0 : i32
    %c0_i32_1 = arith.constant 0 : i32
    return %c0_i32, %c0_i32_0 : i32, i32
  }
  func.func @transform_2(%arg0: i32) -> (i32, i32) {
    %c0_i32 = arith.constant 0 : i32
    %c0_i32_0 = arith.constant 0 : i32
    %c0_i32_1 = arith.constant 0 : i32
    return %c0_i32, %c0_i32_0 : i32, i32
  }
  func.func @transform_3(%arg0: i32) -> (i32, i32) {
    %c0_i32 = arith.constant 0 : i32
    %c0_i32_0 = arith.constant 0 : i32
    %c0_i32_1 = arith.constant 0 : i32
    return %c0_i32, %c0_i32_0 : i32, i32
  }
  func.func @transform_4(%arg0: i32) -> (i32, i32) {
    %c0_i32 = arith.constant 0 : i32
    %c0_i32_0 = arith.constant 0 : i32
    %c0_i32_1 = arith.constant 0 : i32
    return %c0_i32, %c0_i32_0 : i32, i32
  }
  func.func @transform_5(%arg0: i32) -> (i32, i32) {
    %c0_i32 = arith.constant 0 : i32
    %c0_i32_0 = arith.constant 0 : i32
    %c0_i32_1 = arith.constant 0 : i32
    return %c0_i32, %c0_i32_0 : i32, i32
  }
  func.func @transform_6(%arg0: i32) -> (i32, i32) {
    %c0_i32 = arith.constant 0 : i32
    %c0_i32_0 = arith.constant 0 : i32
    %c0_i32_1 = arith.constant 0 : i32
    return %c0_i32, %c0_i32_0 : i32, i32
  }
  func.func @transform_7(%arg0: i32) -> (i32, i32) {
    %c0_i32 = arith.constant 0 : i32
    %c0_i32_0 = arith.constant 0 : i32
    return %c0_i32, %arg0 : i32, i32
  }
}

</mosaic_0001>

<llo_original>
// kernel: dirnn_mlp.1
$region0: #{dirnn_mlp.1}
  #allocation0 [shape = 'u32[]', space=smem, size = 0x4, offset = 0x4, fixed_abs, tag = 'smem constant byte address 0x4 - core index']
  #allocation1 [shape = 'u32[144,128]{1,0:T(1,128)}', space=vmem, size = 0x12000, scoped, tag = 'internal scratch']
  %s0 = inlined_call_operand.vmem [shape: bf16[6,1000], index: 0, kind: input, shape index: {}]
  %s1 = inlined_call_operand.vmem [shape: bf16[128,6], index: 1, kind: input, shape index: {}]
  %s2 = inlined_call_operand.vmem [shape: f32[128,1], index: 2, kind: input, shape index: {}]
  %s3 = inlined_call_operand.vmem [shape: bf16[128,128], index: 3, kind: input, shape index: {}]
  %s4 = inlined_call_operand.vmem [shape: f32[128,1], index: 4, kind: input, shape index: {}]
  %s5 = inlined_call_operand.vmem [shape: bf16[3,128], index: 5, kind: input, shape index: {}]
  %s6 = inlined_call_operand.vmem [shape: f32[3,1], index: 6, kind: input, shape index: {}]
  %s7 = inlined_call_operand.vmem [shape: f32[3,1024], index: 7, kind: output, shape index: {}]
  %s8 = sld [smem:[#allocation0]]
  $region61: #{dirnn_mlp.1} parent=0
    _
  %s10 = ssub.s32 1, %s8
  %s11 = scalar_select 0, %s10, %s8
  loop: start=0, step=1, limit=4
  $region2: #{dirnn_mlp.1} parent=0 // loop_pre_header
    _
  $region3: #{dirnn_mlp.1} parent=0 // loop_header
    %s13 = sphi 0, %s17
    %p14 = scmp.ge.s32.totalorder %s13, 4
    %s23 = sphi 0, %s25
    %s26 = sphi 0, %s23
    %s27 = sphi 0, %s26
    %s43 = sphi 0, %s27
    %s47 = sphi 0, %s47
    %s49 = sphi 0, %s47
    %s50 = sphi 0, %s49
    %s64 = sphi 0, %s50
    %s68 = sphi 0, %s68
    %s70 = sphi 0, %s68
    %s71 = sphi 0, %s70
    %s85 = sphi 0, %s71
    %s89 = sphi 0, %s89
    %s91 = sphi 0, %s89
    %s92 = sphi 0, %s91
    %s106 = sphi 0, %s92
    %s110 = sphi 0, %s110
    %s112 = sphi 0, %s110
    %s113 = sphi 0, %s112
    %s127 = sphi 0, %s113
    %s131 = sphi 0, %s131
    %s133 = sphi 0, %s131
    %s134 = sphi 0, %s133
    %s148 = sphi 0, %s134
    %s152 = sphi 0, %s152
    %s154 = sphi 0, %s152
    %s155 = sphi 0, %s154
    %s169 = sphi 0, %s155
    %s175 = sphi 0, %s177
    %s178 = sphi 0, %s175
    %s179 = sphi 0, %s178
    %s195 = sphi 0, %s179
  $region4: #{dirnn_mlp.1} parent=0 // loop_header_branch
    %16 = sbr.rel (%p14) target = $region8
  $region5: #{dirnn_mlp.1} parent=0 // loop_body
    %s18 = ssub.s32 %s13, 1
    %s19 = ssub.s32 %s13, 2
    %s20 = sadd.s32 %s13, 1
    %s21 = ssub.s32 %s13, %s20
    %p22 = scmp.eq.s32.totalorder %s21, 0
    %s24 = sadd.s32 %s23, 1
    %s25 = scalar_select %p22, %s23, %s24
    %p28 = pneg %p22
    %p29 = scmp.eq.s32.totalorder %s13, 1
    %p30 = por %p28, %p29
    %p31 = scmp.ne.s32.totalorder %s23, %s26
    %p32 = scmp.eq.s32.totalorder %s13, 0
    %p33 = por %p31, %p32
    %p34 = scmp.ne.s32.totalorder %s23, %s26
    %p35 = scmp.eq.s32.totalorder %s18, 1
    %p36 = por %p34, %p35
    %p37 = scmp.ne.s32.totalorder %s26, %s27
    %p38 = scmp.eq.s32.totalorder %s18, 0
    %p39 = por %p37, %p38
    %p40 = scmp.ne.s32.totalorder %s26, %s27
    %p41 = scmp.eq.s32.totalorder %s19, 1
    %p42 = por %p40, %p41
    %p44 = scmp.ne.s32.totalorder %s27, %s43
    %p45 = scmp.eq.s32.totalorder %s19, 0
    %p46 = por %p44, %p45
    %s48 = sadd.s32 %s47, 1
    %p51 = scmp.eq.s32.totalorder %s13, 1
    %p52 = scmp.ne.s32.totalorder %s47, %s49
    %p53 = scmp.eq.s32.totalorder %s13, 0
    %p54 = por %p52, %p53
    %p55 = scmp.ne.s32.totalorder %s47, %s49
    %p56 = scmp.eq.s32.totalorder %s18, 1
    %p57 = por %p55, %p56
    %p58 = scmp.ne.s32.totalorder %s49, %s50
    %p59 = scmp.eq.s32.totalorder %s18, 0
    %p60 = por %p58, %p59
    %p61 = scmp.ne.s32.totalorder %s49, %s50
    %p62 = scmp.eq.s32.totalorder %s19, 1
    %p63 = por %p61, %p62
    %p65 = scmp.ne.s32.totalorder %s50, %s64
    %p66 = scmp.eq.s32.totalorder %s19, 0
    %p67 = por %p65, %p66
    %s69 = sadd.s32 %s68, 1
    %p72 = scmp.eq.s32.totalorder %s13, 1
    %p73 = scmp.ne.s32.totalorder %s68, %s70
    %p74 = scmp.eq.s32.totalorder %s13, 0
    %p75 = por %p73, %p74
    %p76 = scmp.ne.s32.totalorder %s68, %s70
    %p77 = scmp.eq.s32.totalorder %s18, 1
    %p78 = por %p76, %p77
    %p79 = scmp.ne.s32.totalorder %s70, %s71
    %p80 = scmp.eq.s32.totalorder %s18, 0
    %p81 = por %p79, %p80
    %p82 = scmp.ne.s32.totalorder %s70, %s71
    %p83 = scmp.eq.s32.totalorder %s19, 1
    %p84 = por %p82, %p83
    %p86 = scmp.ne.s32.totalorder %s71, %s85
    %p87 = scmp.eq.s32.totalorder %s19, 0
    %p88 = por %p86, %p87
    %s90 = sadd.s32 %s89, 1
    %p93 = scmp.eq.s32.totalorder %s13, 1
    %p94 = scmp.ne.s32.totalorder %s89, %s91
    %p95 = scmp.eq.s32.totalorder %s13, 0
    %p96 = por %p94, %p95
    %p97 = scmp.ne.s32.totalorder %s89, %s91
    %p98 = scmp.eq.s32.totalorder %s18, 1
    %p99 = por %p97, %p98
    %p100 = scmp.ne.s32.totalorder %s91, %s92
    %p101 = scmp.eq.s32.totalorder %s18, 0
    %p102 = por %p100, %p101
    %p103 = scmp.ne.s32.totalorder %s91, %s92
    %p104 = scmp.eq.s32.totalorder %s19, 1
    %p105 = por %p103, %p104
    %p107 = scmp.ne.s32.totalorder %s92, %s106
    %p108 = scmp.eq.s32.totalorder %s19, 0
    %p109 = por %p107, %p108
    %s111 = sadd.s32 %s110, 1
    %p114 = scmp.eq.s32.totalorder %s13, 1
    %p115 = scmp.ne.s32.totalorder %s110, %s112
    %p116 = scmp.eq.s32.totalorder %s13, 0
    %p117 = por %p115, %p116
    %p118 = scmp.ne.s32.totalorder %s110, %s112
    %p119 = scmp.eq.s32.totalorder %s18, 1
    %p120 = por %p118, %p119
    %p121 = scmp.ne.s32.totalorder %s112, %s113
    %p122 = scmp.eq.s32.totalorder %s18, 0
    %p123 = por %p121, %p122
    %p124 = scmp.ne.s32.totalorder %s112, %s113
    %p125 = scmp.eq.s32.totalorder %s19, 1
    %p126 = por %p124, %p125
    %p128 = scmp.ne.s32.totalorder %s113, %s127
    %p129 = scmp.eq.s32.totalorder %s19, 0
    %p130 = por %p128, %p129
    %s132 = sadd.s32 %s131, 1
    %p135 = scmp.eq.s32.totalorder %s13, 1
    %p136 = scmp.ne.s32.totalorder %s131, %s133
    %p137 = scmp.eq.s32.totalorder %s13, 0
    %p138 = por %p136, %p137
    %p139 = scmp.ne.s32.totalorder %s131, %s133
    %p140 = scmp.eq.s32.totalorder %s18, 1
    %p141 = por %p139, %p140
    %p142 = scmp.ne.s32.totalorder %s133, %s134
    %p143 = scmp.eq.s32.totalorder %s18, 0
    %p144 = por %p142, %p143
    %p145 = scmp.ne.s32.totalorder %s133, %s134
    %p146 = scmp.eq.s32.totalorder %s19, 1
    %p147 = por %p145, %p146
    %p149 = scmp.ne.s32.totalorder %s134, %s148
    %p150 = scmp.eq.s32.totalorder %s19, 0
    %p151 = por %p149, %p150
    %s153 = sadd.s32 %s152, 1
    %p156 = scmp.eq.s32.totalorder %s13, 1
    %p157 = scmp.ne.s32.totalorder %s152, %s154
    %p158 = scmp.eq.s32.totalorder %s13, 0
    %p159 = por %p157, %p158
    %p160 = scmp.ne.s32.totalorder %s152, %s154
    %p161 = scmp.eq.s32.totalorder %s18, 1
    %p162 = por %p160, %p161
    %p163 = scmp.ne.s32.totalorder %s154, %s155
    %p164 = scmp.eq.s32.totalorder %s18, 0
    %p165 = por %p163, %p164
    %p166 = scmp.ne.s32.totalorder %s154, %s155
    %p167 = scmp.eq.s32.totalorder %s19, 1
    %p168 = por %p166, %p167
    %p170 = scmp.ne.s32.totalorder %s155, %s169
    %p171 = scmp.eq.s32.totalorder %s19, 0
    %p172 = por %p170, %p171
    %s173 = ssub.s32 %s13, %s20
    %p174 = scmp.eq.s32.totalorder %s173, 0
    %s176 = sadd.s32 %s175, 1
    %s177 = scalar_select %p174, %s175, %s176
    %p180 = pneg %p174
    %p181 = scmp.eq.s32.totalorder %s13, 1
    %p182 = por %p180, %p181
    %p183 = scmp.ne.s32.totalorder %s175, %s178
    %p184 = scmp.eq.s32.totalorder %s13, 0
    %p185 = por %p183, %p184
    %p186 = scmp.ne.s32.totalorder %s175, %s178
    %p187 = scmp.eq.s32.totalorder %s18, 1
    %p188 = por %p186, %p187
    %p189 = scmp.ne.s32.totalorder %s178, %s179
    %p190 = scmp.eq.s32.totalorder %s18, 0
    %p191 = por %p189, %p190
    %p192 = scmp.ne.s32.totalorder %s178, %s179
    %p193 = scmp.eq.s32.totalorder %s19, 1
    %p194 = por %p192, %p193
    %p196 = scmp.ne.s32.totalorder %s179, %s195
    %p197 = scmp.eq.s32.totalorder %s19, 0
    %p198 = por %p196, %p197
    %p199 = scmp.le.s32.totalorder 1, %s13
    %p200 = scmp.lt.s32.totalorder %s13, 3
    %p201 = pnand %p199, %p200
    %p202 = pneg %p201
    // Predicated region
    $region9: #{dirnn_mlp.1} parent=5 // pred_check
      _
    $region10: #{dirnn_mlp.1} parent=5 // pred_check_branch
      %204 = sbr.rel (%p201) target = $region12
    $region11: #{dirnn_mlp.1} parent=5 // pred_region
      %s205 = ssub.s32 %s13, 1
      // Predicated region
      $region13: #{dirnn_mlp.1} parent=11 // pred_check
        %p206 = pneg %p60
      $region14: #{dirnn_mlp.1} parent=11 // pred_check_branch
        %208 = sbr.rel (%p206) target = $region16
      $region15: #{dirnn_mlp.1} parent=11 // pred_region
        _
      $region16: #{dirnn_mlp.1} parent=11 // pred_fallthru
        _
      // Predicated region
      $region17: #{dirnn_mlp.1} parent=11 // pred_check
        %p209 = pneg %p81
      $region18: #{dirnn_mlp.1} parent=11 // pred_check_branch
        %211 = sbr.rel (%p209) target = $region20
      $region19: #{dirnn_mlp.1} parent=11 // pred_region
        _
      $region20: #{dirnn_mlp.1} parent=11 // pred_fallthru
        _
      // Predicated region
      $region21: #{dirnn_mlp.1} parent=11 // pred_check
        %p212 = pneg %p102
      $region22: #{dirnn_mlp.1} parent=11 // pred_check_branch
        %214 = sbr.rel (%p212) target = $region24
      $region23: #{dirnn_mlp.1} parent=11 // pred_region
        _
      $region24: #{dirnn_mlp.1} parent=11 // pred_fallthru
        _
      // Predicated region
      $region25: #{dirnn_mlp.1} parent=11 // pred_check
        %p215 = pneg %p123
      $region26: #{dirnn_mlp.1} parent=11 // pred_check_branch
        %217 = sbr.rel (%p215) target = $region28
      $region27: #{dirnn_mlp.1} parent=11 // pred_region
        _
      $region28: #{dirnn_mlp.1} parent=11 // pred_fallthru
        _
      // Predicated region
      $region29: #{dirnn_mlp.1} parent=11 // pred_check
        %p218 = pneg %p144
      $region30: #{dirnn_mlp.1} parent=11 // pred_check_branch
        %220 = sbr.rel (%p218) target = $region32
      $region31: #{dirnn_mlp.1} parent=11 // pred_region
        _
      $region32: #{dirnn_mlp.1} parent=11 // pred_fallthru
        _
      // Predicated region
      $region33: #{dirnn_mlp.1} parent=11 // pred_check
        %p221 = pneg %p165
      $region34: #{dirnn_mlp.1} parent=11 // pred_check_branch
        %223 = sbr.rel (%p221) target = $region36
      $region35: #{dirnn_mlp.1} parent=11 // pred_region
        _
      $region36: #{dirnn_mlp.1} parent=11 // pred_fallthru
        _
    $region12: #{dirnn_mlp.1} parent=5 // pred_fallthru
      _
    %p224 = scmp.lt.s32.totalorder %s13, 2
    // Predicated region
    $region37: #{dirnn_mlp.1} parent=5 // pred_check
      %p225 = pneg %p224
    $region38: #{dirnn_mlp.1} parent=5 // pred_check_branch
      %227 = sbr.rel (%p225) target = $region40
    $region39: #{dirnn_mlp.1} parent=5 // pred_region
      // Predicated region
      $region41: #{dirnn_mlp.1} parent=39 // pred_check
        %p228 = pneg %p33
      $region42: #{dirnn_mlp.1} parent=39 // pred_check_branch
        %230 = sbr.rel (%p228) target = $region44
      $region43: #{dirnn_mlp.1} parent=39 // pred_region
        %s231 = smul.u32 4, %s13
        %p232 = scmp.lt.s32.totalorder %s231, 7
        %s233 = scalar_select %p232, %s231, 7
        %s234 = smul.addr %s233, 4
        %s235 = scalar_lea.vmem %s0, %s234
        %s236 = smul.u32 4, %s13
      $region44: #{dirnn_mlp.1} parent=39 // pred_fallthru
        _
    $region40: #{dirnn_mlp.1} parent=5 // pred_fallthru
      _
    %p237 = scmp.le.s32.totalorder 1, %s13
    %p238 = scmp.lt.s32.totalorder %s13, 3
    %p239 = pnand %p237, %p238
    %p240 = pneg %p239
    // Predicated region
    $region45: #{dirnn_mlp.1} parent=5 // pred_check
      _
    $region46: #{dirnn_mlp.1} parent=5 // pred_check_branch
      %242 = sbr.rel (%p239) target = $region48
    $region47: #{dirnn_mlp.1} parent=5 // pred_region
      %s243 = ssub.s32 %s13, 1
      %s244 = smul.u32 4, %s18
      %p245 = scmp.lt.s32.totalorder %s244, 7
      %s246 = scalar_select %p245, %s244, 7
      %s247 = smul.addr %s246, 4
      %s248 = scalar_lea.vmem %s0, %s247
      %p249 = pneg %p39
      %p250 = pneg %p36
      %p251 = pneg %p60
      %p252 = pneg %p57
      %p253 = pneg %p81
      %p254 = pneg %p78
      %p255 = pneg %p102
      %p256 = pneg %p99
      %p257 = pneg %p123
      %p258 = pneg %p120
      %p259 = pneg %p144
      %p260 = pneg %p141
      %p261 = pneg %p165
      %p262 = pneg %p162
      %p263 = pneg %p191
      %p264 = pneg %p188
      %s265 = smul.u32 4, %s18
      %p266 = scmp.lt.s32.totalorder %s265, 7
      %s267 = scalar_select %p266, %s265, 7
      %s268 = smul.addr %s267, 4
      %s269 = scalar_lea.vmem %s7, %s268
      %s270 = smul.u32 4, %s18
      %p271 = scmp.lt.s32.totalorder %s270, 7
      %s272 = scalar_select %p271, %s270, 7
      %s273 = smul.addr %s272, 4
      %s274 = scalar_lea.vmem %s0, %s273
      %s275 = smul.u32 4, %s18
      %s276 = smul.u32 4, %s18
      %p277 = scmp.lt.s32.totalorder %s276, 7
      %s278 = scalar_select %p277, %s276, 7
      %s279 = smul.addr %s278, 4
      %s280 = scalar_lea.vmem %s7, %s279
      %s281 = smul.u32 4, %s18
      %v283 = vld [vmem:[%s274] sm:$0x77]
      %v284 = vld [vmem:[%s274 + $0x8] sm:$0x77]
      %v285 = vld [vmem:[%s1] sm:$0xf]
      %v286 = vld [vmem:[%s1 + $0x4] sm:$0xf]
      %v287 = vld [vmem:[%s1 + $0x8] sm:$0xf]
      %v288 = vld [vmem:[%s1 + $0xc] sm:$0xf]
      %v289 = vld [vmem:[%s1 + $0x10] sm:$0xf]
      %v290 = vld [vmem:[%s1 + $0x14] sm:$0xf]
      %v291 = vld [vmem:[%s1 + $0x18] sm:$0xf]
      %v292 = vld [vmem:[%s1 + $0x1c] sm:$0xf]
      %v293 = vld [vmem:[%s1 + $0x20] sm:$0xf]
      %v294 = vld [vmem:[%s1 + $0x24] sm:$0xf]
      %v295 = vld [vmem:[%s1 + $0x28] sm:$0xf]
      %v296 = vld [vmem:[%s1 + $0x2c] sm:$0xf]
      %v297 = vld [vmem:[%s1 + $0x30] sm:$0xf]
      %v298 = vld [vmem:[%s1 + $0x34] sm:$0xf]
      %v299 = vld [vmem:[%s1 + $0x38] sm:$0xf]
      %v300 = vld [vmem:[%s1 + $0x3c] sm:$0xf]
      %v301 = vld [vmem:[%s2] sm:$0xff]
      %v302 = vld [vmem:[%s2 + $0x8] sm:$0xff]
      %v303 = vld [vmem:[%s2 + $0x10] sm:$0xff]
      %v304 = vld [vmem:[%s2 + $0x18] sm:$0xff]
      %v305 = vld [vmem:[%s2 + $0x20] sm:$0xff]
      %v306 = vld [vmem:[%s2 + $0x28] sm:$0xff]
      %v307 = vld [vmem:[%s2 + $0x30] sm:$0xff]
      %v308 = vld [vmem:[%s2 + $0x38] sm:$0xff]
      %v309 = vld [vmem:[%s2 + $0x40] sm:$0xff]
      %v310 = vld [vmem:[%s2 + $0x48] sm:$0xff]
      %v311 = vld [vmem:[%s2 + $0x50] sm:$0xff]
      %v312 = vld [vmem:[%s2 + $0x58] sm:$0xff]
      %v313 = vld [vmem:[%s2 + $0x60] sm:$0xff]
      %v314 = vld [vmem:[%s2 + $0x68] sm:$0xff]
      %v315 = vld [vmem:[%s2 + $0x70] sm:$0xff]
      %v316 = vld [vmem:[%s2 + $0x78] sm:$0xff]
      %318 = vset.pattern.permute.xlu0 0
      %319 = vperm.xlu0 %318, %v301
      %v320 = vpop.permute.xlu0 %319
      %323 = vset.pattern.permute.xlu0 0
      %324 = vperm.xlu0 %323, %v302
      %v325 = vpop.permute.xlu0 %324
      %328 = vset.pattern.permute.xlu0 0
      %329 = vperm.xlu0 %328, %v303
      %v330 = vpop.permute.xlu0 %329
      %333 = vset.pattern.permute.xlu0 0
      %334 = vperm.xlu0 %333, %v304
      %v335 = vpop.permute.xlu0 %334
      %338 = vset.pattern.permute.xlu0 0
      %339 = vperm.xlu0 %338, %v305
      %v340 = vpop.permute.xlu0 %339
      %343 = vset.pattern.permute.xlu0 0
      %344 = vperm.xlu0 %343, %v306
      %v345 = vpop.permute.xlu0 %344
      %348 = vset.pattern.permute.xlu0 0
      %349 = vperm.xlu0 %348, %v307
      %v350 = vpop.permute.xlu0 %349
      %353 = vset.pattern.permute.xlu0 0
      %354 = vperm.xlu0 %353, %v308
      %v355 = vpop.permute.xlu0 %354
      %358 = vset.pattern.permute.xlu0 0
      %359 = vperm.xlu0 %358, %v309
      %v360 = vpop.permute.xlu0 %359
      %363 = vset.pattern.permute.xlu0 0
      %364 = vperm.xlu0 %363, %v310
      %v365 = vpop.permute.xlu0 %364
      %368 = vset.pattern.permute.xlu0 0
      %369 = vperm.xlu0 %368, %v311
      %v370 = vpop.permute.xlu0 %369
      %373 = vset.pattern.permute.xlu0 0
      %374 = vperm.xlu0 %373, %v312
      %v375 = vpop.permute.xlu0 %374
      %378 = vset.pattern.permute.xlu0 0
      %379 = vperm.xlu0 %378, %v313
      %v380 = vpop.permute.xlu0 %379
      %383 = vset.pattern.permute.xlu0 0
      %384 = vperm.xlu0 %383, %v314
      %v385 = vpop.permute.xlu0 %384
      %388 = vset.pattern.permute.xlu0 0
      %389 = vperm.xlu0 %388, %v315
      %v390 = vpop.permute.xlu0 %389
      %393 = vset.pattern.permute.xlu0 0
      %394 = vperm.xlu0 %393, %v316
      %v395 = vpop.permute.xlu0 %394
      %v413 = vunpack.c.l.b16 %v285
      %v414 = vunpack.c.l.b16 %v286
      %v415 = vunpack.c.l.b16 %v287
      %v416 = vunpack.c.l.b16 %v288
      %v417 = vunpack.c.l.b16 %v289
      %v418 = vunpack.c.l.b16 %v290
      %v419 = vunpack.c.l.b16 %v291
      %v420 = vunpack.c.l.b16 %v292
      %v421 = vunpack.c.l.b16 %v293
      %v422 = vunpack.c.l.b16 %v294
      %v423 = vunpack.c.l.b16 %v295
      %v424 = vunpack.c.l.b16 %v296
      %v425 = vunpack.c.l.b16 %v297
      %v426 = vunpack.c.l.b16 %v298
      %v427 = vunpack.c.l.b16 %v299
      %v428 = vunpack.c.l.b16 %v300
      %v429 = vpack.c.b16 %v414, %v413
      %v430 = vpack.c.b16 %v416, %v415
      %v431 = vpack.c.b16 %v418, %v417
      %v432 = vpack.c.b16 %v420, %v419
      %v433 = vpack.c.b16 %v422, %v421
      %v434 = vpack.c.b16 %v424, %v423
      %v435 = vpack.c.b16 %v426, %v425
      %v436 = vpack.c.b16 %v428, %v427
      %v439 = vunpack.c.l.b16 %v283
      %v440 = vunpack.c.h.b16 %v283
      %v441 = vunpack.c.l.b16 %v284
      %v442 = vunpack.c.h.b16 %v284
      %v443 = vpack.c.b16 %v439, %v439
      %v444 = vpack.c.b16 %v440, %v440
      %v445 = vpack.c.b16 %v441, %v441
      %v446 = vpack.c.b16 %v442, %v442
      %vm447 = vcmask 48128
      %v449 = vsel %vm447, %v429, 0
      %v452 = vsel %vm447, %v430, 0
      %v455 = vsel %vm447, %v431, 0
      %v458 = vsel %vm447, %v432, 0
      %v461 = vsel %vm447, %v433, 0
      %v464 = vsel %vm447, %v434, 0
      %v467 = vsel %vm447, %v435, 0
      %v470 = vsel %vm447, %v436, 0
      %vm472 = vcmask 1042432
      %v474 = vsel %vm472, %v443, 0
      %v477 = vsel %vm472, %v444, 0
      %v480 = vsel %vm472, %v445, 0
      %v483 = vsel %vm472, %v446, 0
      %485 = vmatprep.subr.bf16.mxu0 %v477
      %486 = vmatpush1.bf16.msra.mxu0 %v474
      %487 = vmatprep.subr.bf16.mxu0 0
      %488 = vmatpush1.bf16.msra.mxu0 0
      %489 = vmatprep.subr.bf16.mxu0 0
      %490 = vmatpush1.bf16.msra.mxu0 0
      %491 = vmatprep.subr.bf16.mxu0 0
      %492 = vmatpush1.bf16.msra.mxu0 0
      %493 = vmatprep.subr.bf16.mxu0 0
      %494 = vmatpush1.bf16.msra.mxu0 0
      %495 = vmatprep.subr.bf16.mxu0 0
      %496 = vmatpush1.bf16.msra.mxu0 0
      %497 = vmatprep.subr.bf16.mxu0 0
      %498 = vmatpush1.bf16.msra.mxu0 0
      %499 = vmatprep.subr.bf16.mxu0 0
      %500 = vmatpush1.bf16.msra.mxu0 0
      %501 = vmatprep.subr.bf16.mxu0 0
      %502 = vmatpush1.bf16.msra.mxu0 0
      %503 = vmatprep.subr.bf16.mxu0 0
      %504 = vmatpush1.bf16.msra.mxu0 0
      %505 = vmatprep.subr.bf16.mxu0 0
      %506 = vmatpush1.bf16.msra.mxu0 0
      %507 = vmatprep.subr.bf16.mxu0 0
      %508 = vmatpush1.bf16.msra.mxu0 0
      %509 = vmatprep.subr.bf16.mxu0 0
      %510 = vmatpush1.bf16.msra.mxu0 0
      %511 = vmatprep.subr.bf16.mxu0 0
      %512 = vmatpush1.bf16.msra.mxu0 0
      %513 = vmatprep.subr.bf16.mxu0 0
      %514 = vmatpush1.bf16.msra.mxu0 0
      %515 = vmatprep.subr.bf16.mxu0 0
      %516 = vmatpush1.bf16.msra.mxu0 0
      %517 = vmatprep.mubr.bf16.mxu0 0
      %518 = vmatmul.mubr.bf16.gmra.mrb[0].mxu0 %v449
      %v519 = vpop.f32.mrb[0].mxu0
      %v520 = vadd.f32 %v320, %v519
      %v521 = vpop.f32.mrb[0].mxu0
      %v522 = vadd.f32 %v320, %v521
      %v523 = vpop.f32.mrb[0].mxu0
      %v524 = vadd.f32 %v325, %v523
      %v525 = vpop.f32.mrb[0].mxu0
      %v526 = vadd.f32 %v325, %v525
      %527 = vmatprep.mubr.bf16.mxu0 0
      %528 = vmatmul.mubr.bf16.gmra.mrb[0].mxu0 %v452
      %v529 = vpop.f32.mrb[0].mxu0
      %v530 = vadd.f32 %v330, %v529
      %v531 = vpop.f32.mrb[0].mxu0
      %v532 = vadd.f32 %v330, %v531
      %v533 = vpop.f32.mrb[0].mxu0
      %v534 = vadd.f32 %v335, %v533
      %v535 = vpop.f32.mrb[0].mxu0
      %v536 = vadd.f32 %v335, %v535
      %537 = vmatprep.mubr.bf16.mxu0 0
      %538 = vmatmul.mubr.bf16.gmra.mrb[0].mxu0 %v455
      %v539 = vpop.f32.mrb[0].mxu0
      %v540 = vadd.f32 %v340, %v539
      %v541 = vpop.f32.mrb[0].mxu0
      %v542 = vadd.f32 %v340, %v541
      %v543 = vpop.f32.mrb[0].mxu0
      %v544 = vadd.f32 %v345, %v543
      %v545 = vpop.f32.mrb[0].mxu0
      %v546 = vadd.f32 %v345, %v545
      %547 = vmatprep.mubr.bf16.mxu0 0
      %548 = vmatmul.mubr.bf16.gmra.mrb[0].mxu0 %v458
      %v549 = vpop.f32.mrb[0].mxu0
      %v550 = vadd.f32 %v350, %v549
      %v551 = vpop.f32.mrb[0].mxu0
      %v552 = vadd.f32 %v350, %v551
      %v553 = vpop.f32.mrb[0].mxu0
      %v554 = vadd.f32 %v355, %v553
      %v555 = vpop.f32.mrb[0].mxu0
      %v556 = vadd.f32 %v355, %v555
      %557 = vmatprep.mubr.bf16.mxu0 0
      %558 = vmatmul.mubr.bf16.gmra.mrb[0].mxu0 %v461
      %v559 = vpop.f32.mrb[0].mxu0
      %v560 = vadd.f32 %v360, %v559
      %v561 = vpop.f32.mrb[0].mxu0
      %v562 = vadd.f32 %v360, %v561
      %v563 = vpop.f32.mrb[0].mxu0
      %v564 = vadd.f32 %v365, %v563
      %v565 = vpop.f32.mrb[0].mxu0
      %v566 = vadd.f32 %v365, %v565
      %567 = vmatprep.mubr.bf16.mxu0 0
      %568 = vmatmul.mubr.bf16.gmra.mrb[0].mxu0 %v464
      %v569 = vpop.f32.mrb[0].mxu0
      %v570 = vadd.f32 %v370, %v569
      %v571 = vpop.f32.mrb[0].mxu0
      %v572 = vadd.f32 %v370, %v571
      %v573 = vpop.f32.mrb[0].mxu0
      %v574 = vadd.f32 %v375, %v573
      %v575 = vpop.f32.mrb[0].mxu0
      %v576 = vadd.f32 %v375, %v575
      %577 = vmatprep.mubr.bf16.mxu0 0
      %578 = vmatmul.mubr.bf16.gmra.mrb[0].mxu0 %v467
      %v579 = vpop.f32.mrb[0].mxu0
      %v580 = vadd.f32 %v380, %v579
      %v581 = vpop.f32.mrb[0].mxu0
      %v582 = vadd.f32 %v380, %v581
      %v583 = vpop.f32.mrb[0].mxu0
      %v584 = vadd.f32 %v385, %v583
      %v585 = vpop.f32.mrb[0].mxu0
      %v586 = vadd.f32 %v385, %v585
      %587 = vmatprep.mubr.bf16.mxu0 0
      %588 = vmatmul.mubr.bf16.gmra.mrb[0].mxu0 %v470
      %v589 = vpop.f32.mrb[0].mxu0
      %v590 = vadd.f32 %v390, %v589
      %v591 = vpop.f32.mrb[0].mxu0
      %v592 = vadd.f32 %v390, %v591
      %v593 = vpop.f32.mrb[0].mxu0
      %v594 = vadd.f32 %v395, %v593
      %v595 = vpop.f32.mrb[0].mxu0
      %v596 = vadd.f32 %v395, %v595
      %597 = vdwg.mxu0
      %598 = vmatprep.subr.bf16.mxu0 %v483
      %599 = vmatpush1.bf16.msra.mxu0 %v480
      %600 = vmatprep.subr.bf16.mxu0 0
      %601 = vmatpush1.bf16.msra.mxu0 0
      %602 = vmatprep.subr.bf16.mxu0 0
      %603 = vmatpush1.bf16.msra.mxu0 0
      %604 = vmatprep.subr.bf16.mxu0 0
      %605 = vmatpush1.bf16.msra.mxu0 0
      %606 = vmatprep.subr.bf16.mxu0 0
      %607 = vmatpush1.bf16.msra.mxu0 0
      %608 = vmatprep.subr.bf16.mxu0 0
      %609 = vmatpush1.bf16.msra.mxu0 0
      %610 = vmatprep.subr.bf16.mxu0 0
      %611 = vmatpush1.bf16.msra.mxu0 0
      %612 = vmatprep.subr.bf16.mxu0 0
      %613 = vmatpush1.bf16.msra.mxu0 0
      %614 = vmatprep.subr.bf16.mxu0 0
      %615 = vmatpush1.bf16.msra.mxu0 0
      %616 = vmatprep.subr.bf16.mxu0 0
      %617 = vmatpush1.bf16.msra.mxu0 0
      %618 = vmatprep.subr.bf16.mxu0 0
      %619 = vmatpush1.bf16.msra.mxu0 0
      %620 = vmatprep.subr.bf16.mxu0 0
      %621 = vmatpush1.bf16.msra.mxu0 0
      %622 = vmatprep.subr.bf16.mxu0 0
      %623 = vmatpush1.bf16.msra.mxu0 0
      %624 = vmatprep.subr.bf16.mxu0 0
      %625 = vmatpush1.bf16.msra.mxu0 0
      %626 = vmatprep.subr.bf16.mxu0 0
      %627 = vmatpush1.bf16.msra.mxu0 0
      %628 = vmatprep.subr.bf16.mxu0 0
      %629 = vmatpush1.bf16.msra.mxu0 0
      %630 = vmatprep.mubr.bf16.mxu0 0
      %631 = vmatmul.mubr.bf16.gmra.mrb[0].mxu0 %v449
      %v632 = vpop.f32.mrb[0].mxu0
      %v633 = vadd.f32 %v320, %v632
      %v634 = vpop.f32.mrb[0].mxu0
      %v635 = vadd.f32 %v320, %v634
      %v636 = vpop.f32.mrb[0].mxu0
      %v637 = vadd.f32 %v325, %v636
      %v638 = vpop.f32.mrb[0].mxu0
      %v639 = vadd.f32 %v325, %v638
      %640 = vmatprep.mubr.bf16.mxu0 0
      %641 = vmatmul.mubr.bf16.gmra.mrb[0].mxu0 %v452
      %v642 = vpop.f32.mrb[0].mxu0
      %v643 = vadd.f32 %v330, %v642
      %v644 = vpop.f32.mrb[0].mxu0
      %v645 = vadd.f32 %v330, %v644
      %v646 = vpop.f32.mrb[0].mxu0
      %v647 = vadd.f32 %v335, %v646
      %v648 = vpop.f32.mrb[0].mxu0
      %v649 = vadd.f32 %v335, %v648
      %650 = vmatprep.mubr.bf16.mxu0 0
      %651 = vmatmul.mubr.bf16.gmra.mrb[0].mxu0 %v455
      %v652 = vpop.f32.mrb[0].mxu0
      %v653 = vadd.f32 %v340, %v652
      %v654 = vpop.f32.mrb[0].mxu0
      %v655 = vadd.f32 %v340, %v654
      %v656 = vpop.f32.mrb[0].mxu0
      %v657 = vadd.f32 %v345, %v656
      %v658 = vpop.f32.mrb[0].mxu0
      %v659 = vadd.f32 %v345, %v658
      %660 = vmatprep.mubr.bf16.mxu0 0
      %661 = vmatmul.mubr.bf16.gmra.mrb[0].mxu0 %v458
      %v662 = vpop.f32.mrb[0].mxu0
      %v663 = vadd.f32 %v350, %v662
      %v664 = vpop.f32.mrb[0].mxu0
      %v665 = vadd.f32 %v350, %v664
      %v666 = vpop.f32.mrb[0].mxu0
      %v667 = vadd.f32 %v355, %v666
      %v668 = vpop.f32.mrb[0].mxu0
      %v669 = vadd.f32 %v355, %v668
      %670 = vmatprep.mubr.bf16.mxu0 0
      %671 = vmatmul.mubr.bf16.gmra.mrb[0].mxu0 %v461
      %v672 = vpop.f32.mrb[0].mxu0
      %v673 = vadd.f32 %v360, %v672
      %v674 = vpop.f32.mrb[0].mxu0
      %v675 = vadd.f32 %v360, %v674
      %v676 = vpop.f32.mrb[0].mxu0
      %v677 = vadd.f32 %v365, %v676
      %v678 = vpop.f32.mrb[0].mxu0
      %v679 = vadd.f32 %v365, %v678
      %680 = vmatprep.mubr.bf16.mxu0 0
      %681 = vmatmul.mubr.bf16.gmra.mrb[0].mxu0 %v464
      %v682 = vpop.f32.mrb[0].mxu0
      %v683 = vadd.f32 %v370, %v682
      %v684 = vpop.f32.mrb[0].mxu0
      %v685 = vadd.f32 %v370, %v684
      %v686 = vpop.f32.mrb[0].mxu0
      %v687 = vadd.f32 %v375, %v686
      %v688 = vpop.f32.mrb[0].mxu0
      %v689 = vadd.f32 %v375, %v688
      %690 = vmatprep.mubr.bf16.mxu0 0
      %691 = vmatmul.mubr.bf16.gmra.mrb[0].mxu0 %v467
      %v692 = vpop.f32.mrb[0].mxu0
      %v693 = vadd.f32 %v380, %v692
      %v694 = vpop.f32.mrb[0].mxu0
      %v695 = vadd.f32 %v380, %v694
      %v696 = vpop.f32.mrb[0].mxu0
      %v697 = vadd.f32 %v385, %v696
      %v698 = vpop.f32.mrb[0].mxu0
      %v699 = vadd.f32 %v385, %v698
      %700 = vmatprep.mubr.bf16.mxu0 0
      %701 = vmatmul.mubr.bf16.gmra.mrb[0].mxu0 %v470
      %v702 = vpop.f32.mrb[0].mxu0
      %v703 = vadd.f32 %v390, %v702
      %v704 = vpop.f32.mrb[0].mxu0
      %v705 = vadd.f32 %v390, %v704
      %v706 = vpop.f32.mrb[0].mxu0
      %v707 = vadd.f32 %v395, %v706
      %v708 = vpop.f32.mrb[0].mxu0
      %v709 = vadd.f32 %v395, %v708
      %710 = vdwg.mxu0
      %v711 = vmax.f32 %v520, 0.0
      %v712 = vmax.f32 %v522, 0.0
      %v713 = vmax.f32 %v633, 0.0
      %v714 = vmax.f32 %v635, 0.0
      %v715 = vmax.f32 %v524, 0.0
      %v716 = vmax.f32 %v526, 0.0
      %v717 = vmax.f32 %v637, 0.0
      %v718 = vmax.f32 %v639, 0.0
      %v719 = vmax.f32 %v530, 0.0
      %v720 = vmax.f32 %v532, 0.0
      %v721 = vmax.f32 %v643, 0.0
      %v722 = vmax.f32 %v645, 0.0
      %v723 = vmax.f32 %v534, 0.0
      %v724 = vmax.f32 %v536, 0.0
      %v725 = vmax.f32 %v647, 0.0
      %v726 = vmax.f32 %v649, 0.0
      %v727 = vmax.f32 %v540, 0.0
      %v728 = vmax.f32 %v542, 0.0
      %v729 = vmax.f32 %v653, 0.0
      %v730 = vmax.f32 %v655, 0.0
      %v731 = vmax.f32 %v544, 0.0
      %v732 = vmax.f32 %v546, 0.0
      %v733 = vmax.f32 %v657, 0.0
      %v734 = vmax.f32 %v659, 0.0
      %v735 = vmax.f32 %v550, 0.0
      %v736 = vmax.f32 %v552, 0.0
      %v737 = vmax.f32 %v663, 0.0
      %v738 = vmax.f32 %v665, 0.0
      %v739 = vmax.f32 %v554, 0.0
      %v740 = vmax.f32 %v556, 0.0
      %v741 = vmax.f32 %v667, 0.0
      %v742 = vmax.f32 %v669, 0.0
      %v743 = vmax.f32 %v560, 0.0
      %v744 = vmax.f32 %v562, 0.0
      %v745 = vmax.f32 %v673, 0.0
      %v746 = vmax.f32 %v675, 0.0
      %v747 = vmax.f32 %v564, 0.0
      %v748 = vmax.f32 %v566, 0.0
      %v749 = vmax.f32 %v677, 0.0
      %v750 = vmax.f32 %v679, 0.0
      %v751 = vmax.f32 %v570, 0.0
      %v752 = vmax.f32 %v572, 0.0
      %v753 = vmax.f32 %v683, 0.0
      %v754 = vmax.f32 %v685, 0.0
      %v755 = vmax.f32 %v574, 0.0
      %v756 = vmax.f32 %v576, 0.0
      %v757 = vmax.f32 %v687, 0.0
      %v758 = vmax.f32 %v689, 0.0
      %v759 = vmax.f32 %v580, 0.0
      %v760 = vmax.f32 %v582, 0.0
      %v761 = vmax.f32 %v693, 0.0
      %v762 = vmax.f32 %v695, 0.0
      %v763 = vmax.f32 %v584, 0.0
      %v764 = vmax.f32 %v586, 0.0
      %v765 = vmax.f32 %v697, 0.0
      %v766 = vmax.f32 %v699, 0.0
      %v767 = vmax.f32 %v590, 0.0
      %v768 = vmax.f32 %v592, 0.0
      %v769 = vmax.f32 %v703, 0.0
      %v770 = vmax.f32 %v705, 0.0
      %v771 = vmax.f32 %v594, 0.0
      %v772 = vmax.f32 %v596, 0.0
      %v773 = vmax.f32 %v707, 0.0
      %v774 = vmax.f32 %v709, 0.0
      %v775 = vld [vmem:[%s3] sm:$0xf]
      %v776 = vld [vmem:[%s3 + $0x4] sm:$0xf]
      %v777 = vld [vmem:[%s3 + $0x8] sm:$0xf]
      %v778 = vld [vmem:[%s3 + $0xc] sm:$0xf]
      %v779 = vld [vmem:[%s3 + $0x10] sm:$0xf]
      %v780 = vld [vmem:[%s3 + $0x14] sm:$0xf]
      %v781 = vld [vmem:[%s3 + $0x18] sm:$0xf]
      %v782 = vld [vmem:[%s3 + $0x1c] sm:$0xf]
      %v783 = vld [vmem:[%s3 + $0x20] sm:$0xf]
      %v784 = vld [vmem:[%s3 + $0x24] sm:$0xf]
      %v785 = vld [vmem:[%s3 + $0x28] sm:$0xf]
      %v786 = vld [vmem:[%s3 + $0x2c] sm:$0xf]
      %v787 = vld [vmem:[%s3 + $0x30] sm:$0xf]
      %v788 = vld [vmem:[%s3 + $0x34] sm:$0xf]
      %v789 = vld [vmem:[%s3 + $0x38] sm:$0xf]
      %v790 = vld [vmem:[%s3 + $0x3c] sm:$0xf]
      %v791 = vpack.c.bf16 %v715, %v711
      %v792 = vpack.c.bf16 %v716, %v712
      %v793 = vpack.c.bf16 %v717, %v713
      %v794 = vpack.c.bf16 %v718, %v714
      %v795 = vpack.c.bf16 %v723, %v719
      %v796 = vpack.c.bf16 %v724, %v720
      %v797 = vpack.c.bf16 %v725, %v721
      %v798 = vpack.c.bf16 %v726, %v722
      %v799 = vpack.c.bf16 %v731, %v727
      %v800 = vpack.c.bf16 %v732, %v728
      %v801 = vpack.c.bf16 %v733, %v729
      %v802 = vpack.c.bf16 %v734, %v730
      %v803 = vpack.c.bf16 %v739, %v735
      %v804 = vpack.c.bf16 %v740, %v736
      %v805 = vpack.c.bf16 %v741, %v737
      %v806 = vpack.c.bf16 %v742, %v738
      %v807 = vpack.c.bf16 %v747, %v743
      %v808 = vpack.c.bf16 %v748, %v744
      %v809 = vpack.c.bf16 %v749, %v745
      %v810 = vpack.c.bf16 %v750, %v746
      %v811 = vpack.c.bf16 %v755, %v751
      %v812 = vpack.c.bf16 %v756, %v752
      %v813 = vpack.c.bf16 %v757, %v753
      %v814 = vpack.c.bf16 %v758, %v754
      %v815 = vpack.c.bf16 %v763, %v759
      %v816 = vpack.c.bf16 %v764, %v760
      %v817 = vpack.c.bf16 %v765, %v761
      %v818 = vpack.c.bf16 %v766, %v762
      %v819 = vpack.c.bf16 %v771, %v767
      %v820 = vpack.c.bf16 %v772, %v768
      %v821 = vpack.c.bf16 %v773, %v769
      %v822 = vpack.c.bf16 %v774, %v770
      %v823 = vld [vmem:[%s4] sm:$0xff]
      %v824 = vld [vmem:[%s4 + $0x8] sm:$0xff]
      %v825 = vld [vmem:[%s4 + $0x10] sm:$0xff]
      %v826 = vld [vmem:[%s4 + $0x18] sm:$0xff]
      %v827 = vld [vmem:[%s4 + $0x20] sm:$0xff]
      %v828 = vld [vmem:[%s4 + $0x28] sm:$0xff]
      %v829 = vld [vmem:[%s4 + $0x30] sm:$0xff]
      %v830 = vld [vmem:[%s4 + $0x38] sm:$0xff]
      %v831 = vld [vmem:[%s4 + $0x40] sm:$0xff]
      %v832 = vld [vmem:[%s4 + $0x48] sm:$0xff]
      %v833 = vld [vmem:[%s4 + $0x50] sm:$0xff]
      %v834 = vld [vmem:[%s4 + $0x58] sm:$0xff]
      %v835 = vld [vmem:[%s4 + $0x60] sm:$0xff]
      %v836 = vld [vmem:[%s4 + $0x68] sm:$0xff]
      %v837 = vld [vmem:[%s4 + $0x70] sm:$0xff]
      %v838 = vld [vmem:[%s4 + $0x78] sm:$0xff]
      %840 = vset.pattern.permute.xlu0 0
      %841 = vperm.xlu0 %840, %v823
      %v842 = vpop.permute.xlu0 %841
      %845 = vset.pattern.permute.xlu0 0
      %846 = vperm.xlu0 %845, %v824
      %v847 = vpop.permute.xlu0 %846
      %850 = vset.pattern.permute.xlu0 0
      %851 = vperm.xlu0 %850, %v825
      %v852 = vpop.permute.xlu0 %851
      %855 = vset.pattern.permute.xlu0 0
      %856 = vperm.xlu0 %855, %v826
      %v857 = vpop.permute.xlu0 %856
      %860 = vset.pattern.permute.xlu0 0
      %861 = vperm.xlu0 %860, %v827
      %v862 = vpop.permute.xlu0 %861
      %865 = vset.pattern.permute.xlu0 0
      %866 = vperm.xlu0 %865, %v828
      %v867 = vpop.permute.xlu0 %866
      %870 = vset.pattern.permute.xlu0 0
      %871 = vperm.xlu0 %870, %v829
      %v872 = vpop.permute.xlu0 %871
      %875 = vset.pattern.permute.xlu0 0
      %876 = vperm.xlu0 %875, %v830
      %v877 = vpop.permute.xlu0 %876
      %880 = vset.pattern.permute.xlu0 0
      %881 = vperm.xlu0 %880, %v831
      %v882 = vpop.permute.xlu0 %881
      %885 = vset.pattern.permute.xlu0 0
      %886 = vperm.xlu0 %885, %v832
      %v887 = vpop.permute.xlu0 %886
      %890 = vset.pattern.permute.xlu0 0
      %891 = vperm.xlu0 %890, %v833
      %v892 = vpop.permute.xlu0 %891
      %895 = vset.pattern.permute.xlu0 0
      %896 = vperm.xlu0 %895, %v834
      %v897 = vpop.permute.xlu0 %896
      %900 = vset.pattern.permute.xlu0 0
      %901 = vperm.xlu0 %900, %v835
      %v902 = vpop.permute.xlu0 %901
      %905 = vset.pattern.permute.xlu0 0
      %906 = vperm.xlu0 %905, %v836
      %v907 = vpop.permute.xlu0 %906
      %910 = vset.pattern.permute.xlu0 0
      %911 = vperm.xlu0 %910, %v837
      %v912 = vpop.permute.xlu0 %911
      %915 = vset.pattern.permute.xlu0 0
      %916 = vperm.xlu0 %915, %v838
      %v917 = vpop.permute.xlu0 %916
      %v935 = vunpack.c.l.b16 %v775
      %v936 = vunpack.c.l.b16 %v776
      %v937 = vunpack.c.l.b16 %v777
      %v938 = vunpack.c.l.b16 %v778
      %v939 = vunpack.c.l.b16 %v779
      %v940 = vunpack.c.l.b16 %v780
      %v941 = vunpack.c.l.b16 %v781
      %v942 = vunpack.c.l.b16 %v782
      %v943 = vunpack.c.l.b16 %v783
      %v944 = vunpack.c.l.b16 %v784
      %v945 = vunpack.c.l.b16 %v785
      %v946 = vunpack.c.l.b16 %v786
      %v947 = vunpack.c.l.b16 %v787
      %v948 = vunpack.c.l.b16 %v788
      %v949 = vunpack.c.l.b16 %v789
      %v950 = vunpack.c.l.b16 %v790
      %v951 = vpack.c.b16 %v936, %v935
      %v952 = vpack.c.b16 %v938, %v937
      %v953 = vpack.c.b16 %v940, %v939
      %v954 = vpack.c.b16 %v942, %v941
      %v955 = vpack.c.b16 %v944, %v943
      %v956 = vpack.c.b16 %v946, %v945
      %v957 = vpack.c.b16 %v948, %v947
      %v958 = vpack.c.b16 %v950, %v949
      %967 = vmatprep.subr.bf16.mxu0 %v792
      %968 = vmatpush1.bf16.msra.mxu0 %v791
      %969 = vmatprep.subr.bf16.mxu0 %v796
      %970 = vmatpush1.bf16.msra.mxu0 %v795
      %971 = vmatprep.subr.bf16.mxu0 %v800
      %972 = vmatpush1.bf16.msra.mxu0 %v799
      %973 = vmatprep.subr.bf16.mxu0 %v804
      %974 = vmatpush1.bf16.msra.mxu0 %v803
      %975 = vmatprep.subr.bf16.mxu0 %v808
      %976 = vmatpush1.bf16.msra.mxu0 %v807
      %977 = vmatprep.subr.bf16.mxu0 %v812
      %978 = vmatpush1.bf16.msra.mxu0 %v811
      %979 = vmatprep.subr.bf16.mxu0 %v816
      %980 = vmatpush1.bf16.msra.mxu0 %v815
      %981 = vmatprep.subr.bf16.mxu0 %v820
      %982 = vmatpush1.bf16.msra.mxu0 %v819
      %983 = vmatprep.subr.bf16.mxu0 0
      %984 = vmatpush1.bf16.msra.mxu0 0
      %985 = vmatprep.subr.bf16.mxu0 0
      %986 = vmatpush1.bf16.msra.mxu0 0
      %987 = vmatprep.subr.bf16.mxu0 0
      %988 = vmatpush1.bf16.msra.mxu0 0
      %989 = vmatprep.subr.bf16.mxu0 0
      %990 = vmatpush1.bf16.msra.mxu0 0
      %991 = vmatprep.subr.bf16.mxu0 0
      %992 = vmatpush1.bf16.msra.mxu0 0
      %993 = vmatprep.subr.bf16.mxu0 0
      %994 = vmatpush1.bf16.msra.mxu0 0
      %995 = vmatprep.subr.bf16.mxu0 0
      %996 = vmatpush1.bf16.msra.mxu0 0
      %997 = vmatprep.subr.bf16.mxu0 0
      %998 = vmatpush1.bf16.msra.mxu0 0
      %999 = vmatprep.mubr.bf16.mxu0 0
      %1000 = vmatmul.mubr.bf16.gmra.mrb[0].mxu0 %v951
      %v1001 = vpop.f32.mrb[0].mxu0
      %v1002 = vadd.f32 %v842, %v1001
      %v1003 = vpop.f32.mrb[0].mxu0
      %v1004 = vadd.f32 %v842, %v1003
      %v1005 = vpop.f32.mrb[0].mxu0
      %v1006 = vadd.f32 %v847, %v1005
      %v1007 = vpop.f32.mrb[0].mxu0
      %v1008 = vadd.f32 %v847, %v1007
      %1009 = vmatprep.mubr.bf16.mxu0 0
      %1010 = vmatmul.mubr.bf16.gmra.mrb[0].mxu0 %v952
      %v1011 = vpop.f32.mrb[0].mxu0
      %v1012 = vadd.f32 %v852, %v1011
      %v1013 = vpop.f32.mrb[0].mxu0
      %v1014 = vadd.f32 %v852, %v1013
      %v1015 = vpop.f32.mrb[0].mxu0
      %v1016 = vadd.f32 %v857, %v1015
      %v1017 = vpop.f32.mrb[0].mxu0
      %v1018 = vadd.f32 %v857, %v1017
      %1019 = vmatprep.mubr.bf16.mxu0 0
      %1020 = vmatmul.mubr.bf16.gmra.mrb[0].mxu0 %v953
      %v1021 = vpop.f32.mrb[0].mxu0
      %v1022 = vadd.f32 %v862, %v1021
      %v1023 = vpop.f32.mrb[0].mxu0
      %v1024 = vadd.f32 %v862, %v1023
      %v1025 = vpop.f32.mrb[0].mxu0
      %v1026 = vadd.f32 %v867, %v1025
      %v1027 = vpop.f32.mrb[0].mxu0
      %v1028 = vadd.f32 %v867, %v1027
      %1029 = vmatprep.mubr.bf16.mxu0 0
      %1030 = vmatmul.mubr.bf16.gmra.mrb[0].mxu0 %v954
      %v1031 = vpop.f32.mrb[0].mxu0
      %v1032 = vadd.f32 %v872, %v1031
      %v1033 = vpop.f32.mrb[0].mxu0
      %v1034 = vadd.f32 %v872, %v1033
      %v1035 = vpop.f32.mrb[0].mxu0
      %v1036 = vadd.f32 %v877, %v1035
      %v1037 = vpop.f32.mrb[0].mxu0
      %v1038 = vadd.f32 %v877, %v1037
      %1039 = vmatprep.mubr.bf16.mxu0 0
      %1040 = vmatmul.mubr.bf16.gmra.mrb[0].mxu0 %v955
      %v1041 = vpop.f32.mrb[0].mxu0
      %v1042 = vadd.f32 %v882, %v1041
      %v1043 = vpop.f32.mrb[0].mxu0
      %v1044 = vadd.f32 %v882, %v1043
      %v1045 = vpop.f32.mrb[0].mxu0
      %v1046 = vadd.f32 %v887, %v1045
      %v1047 = vpop.f32.mrb[0].mxu0
      %v1048 = vadd.f32 %v887, %v1047
      %1049 = vmatprep.mubr.bf16.mxu0 0
      %1050 = vmatmul.mubr.bf16.gmra.mrb[0].mxu0 %v956
      %v1051 = vpop.f32.mrb[0].mxu0
      %v1052 = vadd.f32 %v892, %v1051
      %v1053 = vpop.f32.mrb[0].mxu0
      %v1054 = vadd.f32 %v892, %v1053
      %v1055 = vpop.f32.mrb[0].mxu0
      %v1056 = vadd.f32 %v897, %v1055
      %v1057 = vpop.f32.mrb[0].mxu0
      %v1058 = vadd.f32 %v897, %v1057
      %1059 = vmatprep.mubr.bf16.mxu0 0
      %1060 = vmatmul.mubr.bf16.gmra.mrb[0].mxu0 %v957
      %v1061 = vpop.f32.mrb[0].mxu0
      %v1062 = vadd.f32 %v902, %v1061
      %v1063 = vpop.f32.mrb[0].mxu0
      %v1064 = vadd.f32 %v902, %v1063
      %v1065 = vpop.f32.mrb[0].mxu0
      %v1066 = vadd.f32 %v907, %v1065
      %v1067 = vpop.f32.mrb[0].mxu0
      %v1068 = vadd.f32 %v907, %v1067
      %1069 = vmatprep.mubr.bf16.mxu0 0
      %1070 = vmatmul.mubr.bf16.gmra.mrb[0].mxu0 %v958
      %v1071 = vpop.f32.mrb[0].mxu0
      %v1072 = vadd.f32 %v912, %v1071
      %v1073 = vpop.f32.mrb[0].mxu0
      %v1074 = vadd.f32 %v912, %v1073
      %v1075 = vpop.f32.mrb[0].mxu0
      %v1076 = vadd.f32 %v917, %v1075
      %v1077 = vpop.f32.mrb[0].mxu0
      %v1078 = vadd.f32 %v917, %v1077
      %1079 = vdwg.mxu0
      %1080 = vmatprep.subr.bf16.mxu0 %v794
      %1081 = vmatpush1.bf16.msra.mxu0 %v793
      %1082 = vmatprep.subr.bf16.mxu0 %v798
      %1083 = vmatpush1.bf16.msra.mxu0 %v797
      %1084 = vmatprep.subr.bf16.mxu0 %v802
      %1085 = vmatpush1.bf16.msra.mxu0 %v801
      %1086 = vmatprep.subr.bf16.mxu0 %v806
      %1087 = vmatpush1.bf16.msra.mxu0 %v805
      %1088 = vmatprep.subr.bf16.mxu0 %v810
      %1089 = vmatpush1.bf16.msra.mxu0 %v809
      %1090 = vmatprep.subr.bf16.mxu0 %v814
      %1091 = vmatpush1.bf16.msra.mxu0 %v813
      %1092 = vmatprep.subr.bf16.mxu0 %v818
      %1093 = vmatpush1.bf16.msra.mxu0 %v817
      %1094 = vmatprep.subr.bf16.mxu0 %v822
      %1095 = vmatpush1.bf16.msra.mxu0 %v821
      %1096 = vmatprep.subr.bf16.mxu0 0
      %1097 = vmatpush1.bf16.msra.mxu0 0
      %1098 = vmatprep.subr.bf16.mxu0 0
      %1099 = vmatpush1.bf16.msra.mxu0 0
      %1100 = vmatprep.subr.bf16.mxu0 0
      %1101 = vmatpush1.bf16.msra.mxu0 0
      %1102 = vmatprep.subr.bf16.mxu0 0
      %1103 = vmatpush1.bf16.msra.mxu0 0
      %1104 = vmatprep.subr.bf16.mxu0 0
      %1105 = vmatpush1.bf16.msra.mxu0 0
      %1106 = vmatprep.subr.bf16.mxu0 0
      %1107 = vmatpush1.bf16.msra.mxu0 0
      %1108 = vmatprep.subr.bf16.mxu0 0
      %1109 = vmatpush1.bf16.msra.mxu0 0
      %1110 = vmatprep.subr.bf16.mxu0 0
      %1111 = vmatpush1.bf16.msra.mxu0 0
      %1112 = vmatprep.mubr.bf16.mxu0 0
      %1113 = vmatmul.mubr.bf16.gmra.mrb[0].mxu0 %v951
      %v1114 = vpop.f32.mrb[0].mxu0
      %v1115 = vadd.f32 %v842, %v1114
      %v1116 = vpop.f32.mrb[0].mxu0
      %v1117 = vadd.f32 %v842, %v1116
      %v1118 = vpop.f32.mrb[0].mxu0
      %v1119 = vadd.f32 %v847, %v1118
      %v1120 = vpop.f32.mrb[0].mxu0
      %v1121 = vadd.f32 %v847, %v1120
      %1122 = vmatprep.mubr.bf16.mxu0 0
      %1123 = vmatmul.mubr.bf16.gmra.mrb[0].mxu0 %v952
      %v1124 = vpop.f32.mrb[0].mxu0
      %v1125 = vadd.f32 %v852, %v1124
      %v1126 = vpop.f32.mrb[0].mxu0
      %v1127 = vadd.f32 %v852, %v1126
      %v1128 = vpop.f32.mrb[0].mxu0
      %v1129 = vadd.f32 %v857, %v1128
      %v1130 = vpop.f32.mrb[0].mxu0
      %v1131 = vadd.f32 %v857, %v1130
      %1132 = vmatprep.mubr.bf16.mxu0 0
      %1133 = vmatmul.mubr.bf16.gmra.mrb[0].mxu0 %v953
      %v1134 = vpop.f32.mrb[0].mxu0
      %v1135 = vadd.f32 %v862, %v1134
      %v1136 = vpop.f32.mrb[0].mxu0
      %v1137 = vadd.f32 %v862, %v1136
      %v1138 = vpop.f32.mrb[0].mxu0
      %v1139 = vadd.f32 %v867, %v1138
      %v1140 = vpop.f32.mrb[0].mxu0
      %v1141 = vadd.f32 %v867, %v1140
      %1142 = vmatprep.mubr.bf16.mxu0 0
      %1143 = vmatmul.mubr.bf16.gmra.mrb[0].mxu0 %v954
      %v1144 = vpop.f32.mrb[0].mxu0
      %v1145 = vadd.f32 %v872, %v1144
      %v1146 = vpop.f32.mrb[0].mxu0
      %v1147 = vadd.f32 %v872, %v1146
      %v1148 = vpop.f32.mrb[0].mxu0
      %v1149 = vadd.f32 %v877, %v1148
      %v1150 = vpop.f32.mrb[0].mxu0
      %v1151 = vadd.f32 %v877, %v1150
      %1152 = vmatprep.mubr.bf16.mxu0 0
      %1153 = vmatmul.mubr.bf16.gmra.mrb[0].mxu0 %v955
      %v1154 = vpop.f32.mrb[0].mxu0
      %v1155 = vadd.f32 %v882, %v1154
      %v1156 = vpop.f32.mrb[0].mxu0
      %v1157 = vadd.f32 %v882, %v1156
      %v1158 = vpop.f32.mrb[0].mxu0
      %v1159 = vadd.f32 %v887, %v1158
      %v1160 = vpop.f32.mrb[0].mxu0
      %v1161 = vadd.f32 %v887, %v1160
      %1162 = vmatprep.mubr.bf16.mxu0 0
      %1163 = vmatmul.mubr.bf16.gmra.mrb[0].mxu0 %v956
      %v1164 = vpop.f32.mrb[0].mxu0
      %v1165 = vadd.f32 %v892, %v1164
      %v1166 = vpop.f32.mrb[0].mxu0
      %v1167 = vadd.f32 %v892, %v1166
      %v1168 = vpop.f32.mrb[0].mxu0
      %v1169 = vadd.f32 %v897, %v1168
      %v1170 = vpop.f32.mrb[0].mxu0
      %v1171 = vadd.f32 %v897, %v1170
      %1172 = vmatprep.mubr.bf16.mxu0 0
      %1173 = vmatmul.mubr.bf16.gmra.mrb[0].mxu0 %v957
      %v1174 = vpop.f32.mrb[0].mxu0
      %v1175 = vadd.f32 %v902, %v1174
      %v1176 = vpop.f32.mrb[0].mxu0
      %v1177 = vadd.f32 %v902, %v1176
      %v1178 = vpop.f32.mrb[0].mxu0
      %v1179 = vadd.f32 %v907, %v1178
      %v1180 = vpop.f32.mrb[0].mxu0
      %v1181 = vadd.f32 %v907, %v1180
      %1182 = vmatprep.mubr.bf16.mxu0 0
      %1183 = vmatmul.mubr.bf16.gmra.mrb[0].mxu0 %v958
      %v1184 = vpop.f32.mrb[0].mxu0
      %v1185 = vadd.f32 %v912, %v1184
      %v1186 = vpop.f32.mrb[0].mxu0
      %v1187 = vadd.f32 %v912, %v1186
      %v1188 = vpop.f32.mrb[0].mxu0
      %v1189 = vadd.f32 %v917, %v1188
      %v1190 = vpop.f32.mrb[0].mxu0
      %v1191 = vadd.f32 %v917, %v1190
      %1192 = vdwg.mxu0
      %v1193 = vmax.f32 %v1002, 0.0
      %v1194 = vmax.f32 %v1004, 0.0
      %v1195 = vmax.f32 %v1115, 0.0
      %v1196 = vmax.f32 %v1117, 0.0
      %v1197 = vmax.f32 %v1006, 0.0
      %v1198 = vmax.f32 %v1008, 0.0
      %v1199 = vmax.f32 %v1119, 0.0
      %v1200 = vmax.f32 %v1121, 0.0
      %v1201 = vmax.f32 %v1012, 0.0
      %v1202 = vmax.f32 %v1014, 0.0
      %v1203 = vmax.f32 %v1125, 0.0
      %v1204 = vmax.f32 %v1127, 0.0
      %v1205 = vmax.f32 %v1016, 0.0
      %v1206 = vmax.f32 %v1018, 0.0
      %v1207 = vmax.f32 %v1129, 0.0
      %v1208 = vmax.f32 %v1131, 0.0
      %v1209 = vmax.f32 %v1022, 0.0
      %v1210 = vmax.f32 %v1024, 0.0
      %v1211 = vmax.f32 %v1135, 0.0
      %v1212 = vmax.f32 %v1137, 0.0
      %v1213 = vmax.f32 %v1026, 0.0
      %v1214 = vmax.f32 %v1028, 0.0
      %v1215 = vmax.f32 %v1139, 0.0
      %v1216 = vmax.f32 %v1141, 0.0
      %v1217 = vmax.f32 %v1032, 0.0
      %v1218 = vmax.f32 %v1034, 0.0
      %v1219 = vmax.f32 %v1145, 0.0
      %v1220 = vmax.f32 %v1147, 0.0
      %v1221 = vmax.f32 %v1036, 0.0
      %v1222 = vmax.f32 %v1038, 0.0
      %v1223 = vmax.f32 %v1149, 0.0
      %v1224 = vmax.f32 %v1151, 0.0
      %v1225 = vmax.f32 %v1042, 0.0
      %v1226 = vmax.f32 %v1044, 0.0
      %v1227 = vmax.f32 %v1155, 0.0
      %v1228 = vmax.f32 %v1157, 0.0
      %v1229 = vmax.f32 %v1046, 0.0
      %v1230 = vmax.f32 %v1048, 0.0
      %v1231 = vmax.f32 %v1159, 0.0
      %v1232 = vmax.f32 %v1161, 0.0
      %v1233 = vmax.f32 %v1052, 0.0
      %v1234 = vmax.f32 %v1054, 0.0
      %v1235 = vmax.f32 %v1165, 0.0
      %v1236 = vmax.f32 %v1167, 0.0
      %v1237 = vmax.f32 %v1056, 0.0
      %v1238 = vmax.f32 %v1058, 0.0
      %v1239 = vmax.f32 %v1169, 0.0
      %v1240 = vmax.f32 %v1171, 0.0
      %v1241 = vmax.f32 %v1062, 0.0
      %v1242 = vmax.f32 %v1064, 0.0
      %v1243 = vmax.f32 %v1175, 0.0
      %v1244 = vmax.f32 %v1177, 0.0
      %v1245 = vmax.f32 %v1066, 0.0
      %v1246 = vmax.f32 %v1068, 0.0
      %v1247 = vmax.f32 %v1179, 0.0
      %v1248 = vmax.f32 %v1181, 0.0
      %v1249 = vmax.f32 %v1072, 0.0
      %v1250 = vmax.f32 %v1074, 0.0
      %v1251 = vmax.f32 %v1185, 0.0
      %v1252 = vmax.f32 %v1187, 0.0
      %v1253 = vmax.f32 %v1076, 0.0
      %v1254 = vmax.f32 %v1078, 0.0
      %v1255 = vmax.f32 %v1189, 0.0
      %v1256 = vmax.f32 %v1191, 0.0
      %v1257 = vld [vmem:[%s5] sm:$0x3]
      %v1258 = vpack.c.bf16 %v1197, %v1193
      %v1259 = vpack.c.bf16 %v1198, %v1194
      %v1260 = vpack.c.bf16 %v1199, %v1195
      %v1261 = vpack.c.bf16 %v1200, %v1196
      %v1262 = vpack.c.bf16 %v1205, %v1201
      %v1263 = vpack.c.bf16 %v1206, %v1202
      %v1264 = vpack.c.bf16 %v1207, %v1203
      %v1265 = vpack.c.bf16 %v1208, %v1204
      %v1266 = vpack.c.bf16 %v1213, %v1209
      %v1267 = vpack.c.bf16 %v1214, %v1210
      %v1268 = vpack.c.bf16 %v1215, %v1211
      %v1269 = vpack.c.bf16 %v1216, %v1212
      %v1270 = vpack.c.bf16 %v1221, %v1217
      %v1271 = vpack.c.bf16 %v1222, %v1218
      %v1272 = vpack.c.bf16 %v1223, %v1219
      %v1273 = vpack.c.bf16 %v1224, %v1220
      %v1274 = vpack.c.bf16 %v1229, %v1225
      %v1275 = vpack.c.bf16 %v1230, %v1226
      %v1276 = vpack.c.bf16 %v1231, %v1227
      %v1277 = vpack.c.bf16 %v1232, %v1228
      %v1278 = vpack.c.bf16 %v1237, %v1233
      %v1279 = vpack.c.bf16 %v1238, %v1234
      %v1280 = vpack.c.bf16 %v1239, %v1235
      %v1281 = vpack.c.bf16 %v1240, %v1236
      %v1282 = vpack.c.bf16 %v1245, %v1241
      %v1283 = vpack.c.bf16 %v1246, %v1242
      %v1284 = vpack.c.bf16 %v1247, %v1243
      %v1285 = vpack.c.bf16 %v1248, %v1244
      %v1286 = vpack.c.bf16 %v1253, %v1249
      %v1287 = vpack.c.bf16 %v1254, %v1250
      %v1288 = vpack.c.bf16 %v1255, %v1251
      %v1289 = vpack.c.bf16 %v1256, %v1252
      %v1290 = vld [vmem:[%s6] sm:$0x7]
      %1292 = vset.pattern.permute.xlu0 0
      %1293 = vperm.xlu0 %1292, %v1290
      %v1294 = vpop.permute.xlu0 %1293
      %1296 = vmatprep.subr.bf16.mxu0 %v1259
      %1297 = vmatpush1.bf16.msra.mxu0 %v1258
      %1298 = vmatprep.subr.bf16.mxu0 %v1263
      %1299 = vmatpush1.bf16.msra.mxu0 %v1262
      %1300 = vmatprep.subr.bf16.mxu0 %v1267
      %1301 = vmatpush1.bf16.msra.mxu0 %v1266
      %1302 = vmatprep.subr.bf16.mxu0 %v1271
      %1303 = vmatpush1.bf16.msra.mxu0 %v1270
      %1304 = vmatprep.subr.bf16.mxu0 %v1275
      %1305 = vmatpush1.bf16.msra.mxu0 %v1274
      %1306 = vmatprep.subr.bf16.mxu0 %v1279
      %1307 = vmatpush1.bf16.msra.mxu0 %v1278
      %1308 = vmatprep.subr.bf16.mxu0 %v1283
      %1309 = vmatpush1.bf16.msra.mxu0 %v1282
      %1310 = vmatprep.subr.bf16.mxu0 %v1287
      %1311 = vmatpush1.bf16.msra.mxu0 %v1286
      %1312 = vmatprep.subr.bf16.mxu0 0
      %1313 = vmatpush1.bf16.msra.mxu0 0
      %1314 = vmatprep.subr.bf16.mxu0 0
      %1315 = vmatpush1.bf16.msra.mxu0 0
      %1316 = vmatprep.subr.bf16.mxu0 0
      %1317 = vmatpush1.bf16.msra.mxu0 0
      %1318 = vmatprep.subr.bf16.mxu0 0
      %1319 = vmatpush1.bf16.msra.mxu0 0
      %1320 = vmatprep.subr.bf16.mxu0 0
      %1321 = vmatpush1.bf16.msra.mxu0 0
      %1322 = vmatprep.subr.bf16.mxu0 0
      %1323 = vmatpush1.bf16.msra.mxu0 0
      %1324 = vmatprep.subr.bf16.mxu0 0
      %1325 = vmatpush1.bf16.msra.mxu0 0
      %1326 = vmatprep.subr.bf16.mxu0 0
      %1327 = vmatpush1.bf16.msra.mxu0 0
      %1328 = vmatprep.mubr.bf16.mxu0 0
      %1329 = vmatmul.mubr.bf16.gmra.mrb[0].mxu0 %v1257
      %v1330 = vpop.f32.mrb[0].mxu0
      %v1331 = vadd.f32 %v1294, %v1330
      %v1332 = vpop.f32.mrb[0].mxu0
      %v1333 = vadd.f32 %v1294, %v1332
      %v1334 = vpop.f32.mrb[0].mxu0
      %v1335 = vpop.f32.mrb[0].mxu0
      %1336 = vdwg.mxu0
      %1337 = vmatprep.subr.bf16.mxu0 %v1261
      %1338 = vmatpush1.bf16.msra.mxu0 %v1260
      %1339 = vmatprep.subr.bf16.mxu0 %v1265
      %1340 = vmatpush1.bf16.msra.mxu0 %v1264
      %1341 = vmatprep.subr.bf16.mxu0 %v1269
      %1342 = vmatpush1.bf16.msra.mxu0 %v1268
      %1343 = vmatprep.subr.bf16.mxu0 %v1273
      %1344 = vmatpush1.bf16.msra.mxu0 %v1272
      %1345 = vmatprep.subr.bf16.mxu0 %v1277
      %1346 = vmatpush1.bf16.msra.mxu0 %v1276
      %1347 = vmatprep.subr.bf16.mxu0 %v1281
      %1348 = vmatpush1.bf16.msra.mxu0 %v1280
      %1349 = vmatprep.subr.bf16.mxu0 %v1285
      %1350 = vmatpush1.bf16.msra.mxu0 %v1284
      %1351 = vmatprep.subr.bf16.mxu0 %v1289
      %1352 = vmatpush1.bf16.msra.mxu0 %v1288
      %1353 = vmatprep.subr.bf16.mxu0 0
      %1354 = vmatpush1.bf16.msra.mxu0 0
      %1355 = vmatprep.subr.bf16.mxu0 0
      %1356 = vmatpush1.bf16.msra.mxu0 0
      %1357 = vmatprep.subr.bf16.mxu0 0
      %1358 = vmatpush1.bf16.msra.mxu0 0
      %1359 = vmatprep.subr.bf16.mxu0 0
      %1360 = vmatpush1.bf16.msra.mxu0 0
      %1361 = vmatprep.subr.bf16.mxu0 0
      %1362 = vmatpush1.bf16.msra.mxu0 0
      %1363 = vmatprep.subr.bf16.mxu0 0
      %1364 = vmatpush1.bf16.msra.mxu0 0
      %1365 = vmatprep.subr.bf16.mxu0 0
      %1366 = vmatpush1.bf16.msra.mxu0 0
      %1367 = vmatprep.subr.bf16.mxu0 0
      %1368 = vmatpush1.bf16.msra.mxu0 0
      %1369 = vmatprep.mubr.bf16.mxu0 0
      %1370 = vmatmul.mubr.bf16.gmra.mrb[0].mxu0 %v1257
      %v1371 = vpop.f32.mrb[0].mxu0
      %v1372 = vadd.f32 %v1294, %v1371
      %v1373 = vpop.f32.mrb[0].mxu0
      %v1374 = vadd.f32 %v1294, %v1373
      %v1375 = vpop.f32.mrb[0].mxu0
      %v1376 = vpop.f32.mrb[0].mxu0
      %1377 = vdwg.mxu0
      %v1382 = vcombine.low %v1331, %v1333
      %v1383 = vcombine.low %v1372, %v1374
      %1386 = vst [vmem:[%s280] sm:$0x77] %v1382
      %1387 = vst [vmem:[%s280 + $0x8] sm:$0x77] %v1383
      %s1388 = smul.u32 4, %s18
      %p1389 = scmp.lt.s32.totalorder %s1388, 7
      %s1390 = scalar_select %p1389, %s1388, 7
      %s1391 = smul.addr %s1390, 4
      %s1392 = scalar_lea.vmem %s7, %s1391
      // Predicated region
      $region49: #{dirnn_mlp.1} parent=47 // pred_check
        %p1393 = pneg %p188
      $region50: #{dirnn_mlp.1} parent=47 // pred_check_branch
        %1395 = sbr.rel (%p1393) target = $region52
      $region51: #{dirnn_mlp.1} parent=47 // pred_region
        %s1396 = smul.u32 4, %s18
      $region52: #{dirnn_mlp.1} parent=47 // pred_fallthru
        _
    $region48: #{dirnn_mlp.1} parent=5 // pred_fallthru
      _
    %p1397 = scmp.le.s32.totalorder 2, %s13
    // Predicated region
    $region53: #{dirnn_mlp.1} parent=5 // pred_check
      %p1398 = pneg %p1397
    $region54: #{dirnn_mlp.1} parent=5 // pred_check_branch
      %1400 = sbr.rel (%p1398) target = $region56
    $region55: #{dirnn_mlp.1} parent=5 // pred_region
      %s1401 = ssub.s32 %s13, 2
      // Predicated region
      $region57: #{dirnn_mlp.1} parent=55 // pred_check
        %p1402 = pneg %p194
      $region58: #{dirnn_mlp.1} parent=55 // pred_check_branch
        %1404 = sbr.rel (%p1402) target = $region60
      $region59: #{dirnn_mlp.1} parent=55 // pred_region
        %s1405 = smul.u32 4, %s19
        %p1406 = scmp.lt.s32.totalorder %s1405, 7
        %s1407 = scalar_select %p1406, %s1405, 7
        %s1408 = smul.addr %s1407, 4
        %s1409 = scalar_lea.vmem %s7, %s1408
      $region60: #{dirnn_mlp.1} parent=55 // pred_fallthru
        _
    $region56: #{dirnn_mlp.1} parent=5 // pred_fallthru
      _
  $region6: #{dirnn_mlp.1} parent=0 // loop_footer
    %s17 = sadd.s32 1, %s13
  $region7: #{dirnn_mlp.1} parent=0 // loop_footer_branch
    %12 = sbr.rel target = $region3
  $region8: #{dirnn_mlp.1} parent=0 // loop_exit
    _

</llo_original>
